<compile_context>
chip_gen: v6e
topology: v6e:2x2x1
jax: 0.10.0
libtpu: 0.0.40
codegen_flags: <defaults>
</compile_context>

<pallas_src>
import functools
import math

import jax
import jax.numpy as jnp
from jax.experimental import pallas as pl
from jax.experimental.pallas import tpu as pltpu


def _round_up(x, m):
    return ((x + m - 1) // m) * m


def _attention_kernel(x_ref, wqkv_ref, o_ref, *, d_pad):
    """One grid step = b_tile independent attention instances.

    x_ref:    (b_tile, S, d_in)   matmul dtype (bf16 or f32)
    wqkv_ref: (d_in, 3*d_pad)     matmul dtype; scale folded into Q columns
    o_ref:    (b_tile, S, d_pad)  float32; d_pad % 128 == 0 -> lane-dense store
    """
    b_tile, s, d_in = x_ref.shape
    mm_dtype = x_ref.dtype

    # Fused QKV projection on a flattened LHS: one MXU weight push per step,
    # b_tile*S rows fed per pass.  Merging leading dims keeps the lane axis
    # unchanged (cheap reshape).
    x2 = x_ref[...].reshape(b_tile * s, d_in)
    qkv = jnp.dot(x2, wqkv_ref[...],
                  preferred_element_type=jnp.float32)          # (b*s, 3*d_pad) f32

    # d_pad is a multiple of 128 -> these column slices sit exactly on lane
    # tile boundaries (no cross-lane shuffles / relayout copies).
    q = qkv[:, :d_pad].reshape(b_tile, s, d_pad).astype(mm_dtype)
    k = qkv[:, d_pad:2 * d_pad].reshape(b_tile, s, d_pad).astype(mm_dtype)
    v = qkv[:, 2 * d_pad:].reshape(b_tile, s, d_pad).astype(mm_dtype)

    # scores = q @ k^T per instance; 1/sqrt(d_out) already folded into Wq.
    scores = jnp.einsum('bqd,bkd->bqk', q, k,
                        preferred_element_type=jnp.float32)    # (b, s, s) f32

    # Numerically stable softmax, kept in f32 on VPU/EUP.
    m = jnp.max(scores, axis=-1, keepdims=True)
    e = jnp.exp(scores - m)
    denom = jnp.sum(e, axis=-1, keepdims=True)
    attn = (e * pl.reciprocal(denom, approx=True)).astype(mm_dtype)  # EUP vrcp

    ctx = jnp.einsum('bqk,bkd->bqd', attn, v,
                     preferred_element_type=jnp.float32)       # (b, s, d_pad) f32

    # Lane-dense store (last dim a multiple of 128 -> unmasked vst).
    o_ref[...] = ctx.astype(o_ref.dtype)


def self_attention_v1(x, w_query, w_key, w_value, *, matmul_dtype=jnp.bfloat16):
    """Pallas TPU forward of SelfAttention_v1.

    x:        (seq, d_in) or (batch, seq, d_in)
    w_*:      (d_in, d_out)
    returns:  (seq, d_out) or (batch, seq, d_out), float32
    """
    squeeze_batch = (x.ndim == 2)
    if squeeze_batch:
        x = x[None]                                   # (1, S, d_in)
    batch, seq, d_in = x.shape
    d_out = w_query.shape[1]
    scale = 1.0 / math.sqrt(d_out)

    # Pad each projection's output dim up to a multiple of 128 lanes:
    # tile-aligned qkv slices in-kernel + lane-dense output stores.
    # Zero-padded Q/K/V columns do not change scores or context values.
    d_pad = _round_up(d_out, 128)

    def pad_cols(w):
        return w if d_pad == d_out else jnp.pad(w, ((0, 0), (0, d_pad - d_out)))

    # Fold the softmax scale into W_query once, then fuse Q/K/V weights.
    wqkv = jnp.concatenate(
        [pad_cols(w_query * scale), pad_cols(w_key), pad_cols(w_value)],
        axis=1).astype(matmul_dtype)                  # (d_in, 3*d_pad)

    # Batch-tile so each grid step feeds ~256 LHS rows to the MXU (one full
    # 256-row pass on v6e/v7x, two 128-row passes on v5e), capped by a modest
    # VMEM budget for the in-kernel f32 intermediates (keeps us well inside
    # the scoped VMEM defaults on every generation, incl. v7x's 64 MiB).
    target_rows = 256
    per_inst_bytes = 4 * (5 * seq * d_pad + 3 * seq * seq)
    vmem_budget = 8 * 1024 * 1024
    b_tile = max(1, target_rows // max(seq, 1))
    b_tile = max(1, min(b_tile, vmem_budget // max(per_inst_bytes, 1)))
    b_tile = min(b_tile, batch)

    num_tiles = pl.cdiv(batch, b_tile)
    batch_pad = num_tiles * b_tile

    xm = x.astype(matmul_dtype)
    if batch_pad != batch:
        # Padded instances produce finite garbage (uniform softmax over zero
        # scores) and are sliced away below.
        xm = jnp.pad(xm, ((0, batch_pad - batch), (0, 0), (0, 0)))

    kernel = functools.partial(_attention_kernel, d_pad=d_pad)

    out = pl.pallas_call(
        kernel,
        out_shape=jax.ShapeDtypeStruct((batch_pad, seq, d_pad), jnp.float32),
        grid=(num_tiles,),
        in_specs=[
            # b_tile independent instances per grid step.
            pl.BlockSpec((b_tile, seq, d_in), lambda i: (i, 0, 0)),
            # Grid-invariant fused weights: constant block index -> the
            # pipeline keeps the resident copy instead of re-fetching.
            pl.BlockSpec((d_in, 3 * d_pad), lambda i: (0, 0)),
        ],
        out_specs=pl.BlockSpec((b_tile, seq, d_pad), lambda i: (i, 0, 0)),
        compiler_params=pltpu.CompilerParams(
            # Batch tiles are independent -> shardable across TensorCores.
            dimension_semantics=("parallel",)),
    )(xm, wqkv)

    out = out[:batch, :, :d_out]
    return out[0] if squeeze_batch else out


def _reference(x, wq, wk, wv):
    keys = x @ wk
    queries = x @ wq
    values = x @ wv
    scores = queries @ jnp.swapaxes(keys, -1, -2)
    weights = jax.nn.softmax(scores / math.sqrt(keys.shape[-1]), axis=-1)
    return weights @ values


if __name__ == "__main__":
    # Small shapes consistent with the module: seq=8 tokens, d_in=32, d_out=32.
    seq, d_in, d_out = 8, 32, 32

    key = jax.random.PRNGKey(0)
    kx, kq, kk, kv, kb, kc = jax.random.split(key, 6)

    x = jax.random.normal(kx, (seq, d_in), dtype=jnp.float32)
    w_query = jax.random.normal(kq, (d_in, d_out), dtype=jnp.float32) * 0.1
    w_key   = jax.random.normal(kk, (d_in, d_out), dtype=jnp.float32) * 0.1
    w_value = jax.random.normal(kv, (d_in, d_out), dtype=jnp.float32) * 0.1

    ref = _reference(x, w_query, w_key, w_value)

    # bf16 MXU path (default): looser tolerance for bf16 operand rounding.
    out_bf16 = jax.block_until_ready(
        self_attention_v1(x, w_query, w_key, w_value))
    assert out_bf16.shape == (seq, d_out)
    assert jnp.allclose(out_bf16, ref, atol=3e-2, rtol=3e-2), \
        "bf16 kernel mismatch vs reference"

    # f32 MXU path: tighter tolerance (approx reciprocal + default precision).
    out_f32 = jax.block_until_ready(
        self_attention_v1(x, w_query, w_key, w_value,
                          matmul_dtype=jnp.float32))
    assert jnp.allclose(out_f32, ref, atol=3e-3, rtol=3e-3), \
        "f32 kernel mismatch vs reference"

    # Batched usage: several instances fused into one grid step (lane-dense
    # 128-wide output block, flattened QKV projection).
    xb = jax.random.normal(kb, (4, seq, d_in), dtype=jnp.float32)
    out_b = jax.block_until_ready(
        self_attention_v1(xb, w_query, w_key, w_value))
    ref_b = _reference(xb, w_query, w_key, w_value)
    assert out_b.shape == (4, seq, d_out)
    assert jnp.allclose(out_b, ref_b, atol=3e-2, rtol=3e-2), \
        "batched kernel mismatch vs reference"

    # Larger batch: exercises multi-step parallel grid and batch padding.
    xc = jax.random.normal(kc, (40, seq, d_in), dtype=jnp.float32)
    out_c = jax.block_until_ready(
        self_attention_v1(xc, w_query, w_key, w_value))
    ref_c = _reference(xc, w_query, w_key, w_value)
    assert out_c.shape == (40, seq, d_out)
    assert jnp.allclose(out_c, ref_c, atol=3e-2, rtol=3e-2), \
        "multi-tile batched kernel mismatch vs reference"

    print("KERNEL_OK")
</pallas_src>

<mosaic_0001>
module attributes {stable_mosaic.version = 11 : i64} {
  func.func @_attention_kernel(%arg0: i32, %arg1: memref<1x8x32xbf16, #tpu.memory_space<vmem>>, %arg2: memref<32x384xbf16, #tpu.memory_space<vmem>>, %arg3: memref<1x8x128xf32, #tpu.memory_space<vmem>>) attributes {dimension_semantics = [#tpu.dimension_semantics<parallel>], iteration_bounds = array<i64: 1>, scalar_prefetch = 0 : i64, scratch_operands = 0 : i64, tpu.core_type = #tpu.core_type<tc>, window_params = [{transform_indices = @transform_0, window_bounds = array<i64: 1, 8, 32>}, {pipeline_mode = #tpu.pipeline_mode<synchronous>, transform_indices = @transform_1, window_bounds = array<i64: 32, 384>}, {transform_indices = @transform_2, window_bounds = array<i64: 1, 8, 128>}]} {
    %c0 = arith.constant 0 : index
    %c0_0 = arith.constant 0 : index
    %c0_1 = arith.constant 0 : index
    %0 = vector.load %arg1[%c0, %c0_0, %c0_1] : memref<1x8x32xbf16, #tpu.memory_space<vmem>>, vector<1x8x32xbf16>
    %1 = vector.shape_cast %0 : vector<1x8x32xbf16> to vector<8x32xbf16>
    %c0_2 = arith.constant 0 : index
    %c0_3 = arith.constant 0 : index
    %2 = vector.load %arg2[%c0_2, %c0_3] : memref<32x384xbf16, #tpu.memory_space<vmem>>, vector<32x384xbf16>
    %cst = arith.constant dense<0.000000e+00> : vector<8x384xf32>
    %3 = tpu.matmul %1, %2, %cst {dimension_numbers = #tpu.dot_dimension_numbers<[1], [0], [0], [1], [0, 0, 1, 1], [], []>} : vector<8x32xbf16>, vector<32x384xbf16>, vector<8x384xf32> -> vector<8x384xf32>
    %4 = vector.extract_strided_slice %3 {offsets = [0, 0], sizes = [8, 128], strides = [1, 1]} : vector<8x384xf32> to vector<8x128xf32>
    %5 = vector.shape_cast %4 : vector<8x128xf32> to vector<1x8x128xf32>
    %6 = arith.truncf %5 : vector<1x8x128xf32> to vector<1x8x128xbf16>
    %7 = vector.extract_strided_slice %3 {offsets = [0, 128], sizes = [8, 128], strides = [1, 1]} : vector<8x384xf32> to vector<8x128xf32>
    %8 = vector.shape_cast %7 : vector<8x128xf32> to vector<1x8x128xf32>
    %9 = arith.truncf %8 : vector<1x8x128xf32> to vector<1x8x128xbf16>
    %10 = vector.extract_strided_slice %3 {offsets = [0, 256], sizes = [8, 128], strides = [1, 1]} : vector<8x384xf32> to vector<8x128xf32>
    %11 = vector.shape_cast %10 : vector<8x128xf32> to vector<1x8x128xf32>
    %12 = arith.truncf %11 : vector<1x8x128xf32> to vector<1x8x128xbf16>
    "tpu.trace_start"() <{level = 10 : i32, message = "bqd,bkd->bqk"}> : () -> ()
    %cst_4 = arith.constant dense<0.000000e+00> : vector<1x8x8xf32>
    %13 = tpu.matmul %6, %9, %cst_4 {dimension_numbers = #tpu.dot_dimension_numbers<[2], [2], [1], [1], [0, 0, 0, 1, 1, 1], [0], [0]>} : vector<1x8x128xbf16>, vector<1x8x128xbf16>, vector<1x8x8xf32> -> vector<1x8x8xf32>
    "tpu.trace_stop"() : () -> ()
    %cst_5 = arith.constant dense<0xFF800000> : vector<1x8xf32>
    %14 = vector.multi_reduction <maximumf>, %13, %cst_5 [2] : vector<1x8x8xf32> to vector<1x8xf32>
    %15 = vector.shape_cast %14 : vector<1x8xf32> to vector<1x8x1xf32>
    %16 = vector.broadcast %15 : vector<1x8x1xf32> to vector<1x8x8xf32>
    %17 = arith.subf %13, %16 : vector<1x8x8xf32>
    %18 = math.exp %17 : vector<1x8x8xf32>
    %cst_6 = arith.constant dense<0.000000e+00> : vector<1x8xf32>
    %19 = vector.multi_reduction <add>, %18, %cst_6 [2] : vector<1x8x8xf32> to vector<1x8xf32>
    %20 = vector.shape_cast %19 : vector<1x8xf32> to vector<1x8x1xf32>
    %21 = tpu.reciprocal %20 {approx = true} : vector<1x8x1xf32> -> vector<1x8x1xf32>
    %22 = vector.broadcast %21 : vector<1x8x1xf32> to vector<1x8x8xf32>
    %23 = arith.mulf %18, %22 : vector<1x8x8xf32>
    %24 = arith.truncf %23 : vector<1x8x8xf32> to vector<1x8x8xbf16>
    "tpu.trace_start"() <{level = 10 : i32, message = "bqk,bkd->bqd"}> : () -> ()
    %cst_7 = arith.constant dense<0.000000e+00> : vector<1x8x128xf32>
    %25 = tpu.matmul %24, %12, %cst_7 {dimension_numbers = #tpu.dot_dimension_numbers<[2], [1], [1], [2], [0, 0, 0, 1, 1, 2], [0], [0]>} : vector<1x8x8xbf16>, vector<1x8x128xbf16>, vector<1x8x128xf32> -> vector<1x8x128xf32>
    "tpu.trace_stop"() : () -> ()
    %c0_8 = arith.constant 0 : index
    %c0_9 = arith.constant 0 : index
    %c0_10 = arith.constant 0 : index
    %26 = vector.load %arg3[%c0_8, %c0_9, %c0_10] : memref<1x8x128xf32, #tpu.memory_space<vmem>>, vector<1x8x128xf32>
    tpu.vector_store %arg3[%c0_8, %c0_9, %c0_10], %25 {strides = array<i32>} : memref<1x8x128xf32, #tpu.memory_space<vmem>>, vector<1x8x128xf32>,
    return
  }
  func.func @transform_0(%arg0: i32) -> (i32, i32, i32) {
    %c0_i32 = arith.constant 0 : i32
    %c0_i32_0 = arith.constant 0 : i32
    %c0_i32_1 = arith.constant 0 : i32
    return %arg0, %c0_i32, %c0_i32_0 : i32, i32, i32
  }
  func.func @transform_1(%arg0: i32) -> (i32, i32) {
    %c0_i32 = arith.constant 0 : i32
    %c0_i32_0 = arith.constant 0 : i32
    %c0_i32_1 = arith.constant 0 : i32
    return %c0_i32, %c0_i32_0 : i32, i32
  }
  func.func @transform_2(%arg0: i32) -> (i32, i32, i32) {
    %c0_i32 = arith.constant 0 : i32
    %c0_i32_0 = arith.constant 0 : i32
    %c0_i32_1 = arith.constant 0 : i32
    return %arg0, %c0_i32, %c0_i32_0 : i32, i32, i32
  }
}

</mosaic_0001>

<llo_original>
// kernel: tpu_custom_call.1
$region0: #{tpu_custom_call.1}
  #allocation0 [shape = 'u32[]', space=smem, size = 0x4, offset = 0x4, fixed_abs, tag = 'smem constant byte address 0x4 - core index']
  #allocation1 [shape = 'u32[144,128]{1,0:T(1,128)}', space=vmem, size = 0x12000, scoped, tag = 'internal scratch']
  %s0 = inlined_call_operand.hbm [shape: bf16[1,8,32], index: 0, kind: input, shape index: {}]
  %s1 = inlined_call_operand.hbm [shape: bf16[32,384], index: 1, kind: input, shape index: {}]
  %s2 = inlined_call_operand.hbm [shape: f32[1,8,128], index: 2, kind: output, shape index: {}]
  %s3 = sld [smem:[#allocation0]]
  $region26: #{tpu_custom_call.1} parent=0
    _
  %s5 = ssub.s32 1, %s3
  %s6 = scalar_select 0, %s5, %s3
  $region1: #{tpu_custom_call.1} parent=0
    #allocation2 [shape = 'u8[2048]{0}', space=vmem, size = 0x800, scoped, tag = 'input window, operand 0, single buffered']
    #allocation3 [shape = 's32[1]{0}', space=sflag, size = 0x4, scoped, tag = 'scoped memory for tpu_custom_call.1']
    #allocation4 [shape = 's32[1]{0}', space=sflag, size = 0x4, scoped, tag = 'scoped memory for tpu_custom_call.1']
    #allocation5 [shape = 'u8[24576]{0}', space=vmem, size = 0x6000, scoped, tag = 'input window, operand 1, single buffered']
    #allocation6 [shape = 's32[1]{0}', space=sflag, size = 0x4, scoped, tag = 'scoped memory for tpu_custom_call.1']
    #allocation7 [shape = 'u8[4096]{0}', space=vmem, size = 0x1000, scoped, tag = 'output window, operand 0, single buffered']
    %7 = vsyncpa [#allocation3], 0
    %8 = vsyncpa [#allocation6], 0
    %9 = vsyncpa [#allocation4], 0
    // Predicated region
    $region2: #{tpu_custom_call.1} parent=1 // pred_check
      _
    $region3: #{tpu_custom_call.1} parent=1 // pred_check_branch
      %11 = sbr.rel (0) target = $region5
    $region4: #{tpu_custom_call.1} parent=1 // pred_region
      %s13 = ssub.s32 64, 64
      %14 = vsyncadd [#allocation3], %s13
      %s16 = sshll.u32 [#allocation2], 4
      %s17 = int_to_ptr.vmem [resolvable:$true] %s16
      %19 = dma.hbm_to_vmem [thread:$0]  %s0, 64, %s17, [#allocation3]
    $region5: #{tpu_custom_call.1} parent=1 // pred_fallthru
      _
    // Predicated region
    $region6: #{tpu_custom_call.1} parent=1 // pred_check
      _
    $region7: #{tpu_custom_call.1} parent=1 // pred_check_branch
      %21 = sbr.rel (0) target = $region9
    $region8: #{tpu_custom_call.1} parent=1 // pred_region
      %s23 = ssub.s32 768, 768
      %24 = vsyncadd [#allocation6], %s23
      %s25 = sshll.u32 [#allocation5], 4
      %s26 = int_to_ptr.vmem [resolvable:$true] %s25
      %31 = dma.hbm_to_vmem [thread:$0]  %s1, 768, %s26, [#allocation6], 192, 192, 12
    $region9: #{tpu_custom_call.1} parent=1 // pred_fallthru
      _
    // Predicated region
    $region10: #{tpu_custom_call.1} parent=1 // pred_check
      _
    $region11: #{tpu_custom_call.1} parent=1 // pred_check_branch
      %33 = sbr.rel (0) target = $region13
    $region12: #{tpu_custom_call.1} parent=1 // pred_region
      %34 = dma.done [#allocation3], 64
    $region13: #{tpu_custom_call.1} parent=1 // pred_fallthru
      _
    // Predicated region
    $region14: #{tpu_custom_call.1} parent=1 // pred_check
      _
    $region15: #{tpu_custom_call.1} parent=1 // pred_check_branch
      %36 = sbr.rel (0) target = $region17
    $region16: #{tpu_custom_call.1} parent=1 // pred_region
      %37 = dma.done [#allocation6], 768
    $region17: #{tpu_custom_call.1} parent=1 // pred_fallthru
      _
    %v39 = vld [vmem:[#allocation2] sm:$0xf]
    %v40 = vld [vmem:[#allocation5] sm:$0xff]
    %v41 = vld [vmem:[#allocation5 + $0x8] sm:$0xf]
    %v42 = vld [vmem:[#allocation5 + $0xc] sm:$0xff]
    %v43 = vld [vmem:[#allocation5 + $0x14] sm:$0xf]
    %v44 = vld [vmem:[#allocation5 + $0x18] sm:$0xff]
    %v45 = vld [vmem:[#allocation5 + $0x20] sm:$0xf]
    %v46 = vld [vmem:[#allocation5 + $0x24] sm:$0xff]
    %v47 = vld [vmem:[#allocation5 + $0x2c] sm:$0xf]
    %v56 = vunpack.c.l.b16 %v40
    %v57 = vunpack.c.h.b16 %v40
    %v58 = vunpack.c.l.b16 %v41
    %v59 = vunpack.c.l.b16 %v42
    %v60 = vunpack.c.h.b16 %v42
    %v61 = vunpack.c.l.b16 %v43
    %v62 = vunpack.c.l.b16 %v44
    %v63 = vunpack.c.h.b16 %v44
    %v64 = vunpack.c.l.b16 %v45
    %v65 = vunpack.c.l.b16 %v46
    %v66 = vunpack.c.h.b16 %v46
    %v67 = vunpack.c.l.b16 %v47
    %v68 = vpack.c.b16 %v59, %v56
    %v69 = vpack.c.b16 %v60, %v57
    %v70 = vpack.c.b16 %v61, %v58
    %v71 = vpack.c.b16 %v65, %v62
    %v72 = vpack.c.b16 %v66, %v63
    %v73 = vpack.c.b16 %v67, %v64
    %vm80 = vcmask 261120
    %v82 = vsel %vm80, %v39, 0
    %84 = vmatprep.subr.bf16.mxu0 0
    %85 = vmatpush1.bf16.msra.mxu0 0
    %86 = vmatprep.subr.bf16.mxu0 0
    %87 = vmatpush1.bf16.msra.mxu0 0
    %88 = vmatprep.subr.bf16.mxu0 0
    %89 = vmatpush1.bf16.msra.mxu0 0
    %90 = vmatprep.subr.bf16.mxu0 0
    %91 = vmatpush1.bf16.msra.mxu0 0
    %92 = vmatprep.subr.bf16.mxu0 0
    %93 = vmatpush1.bf16.msra.mxu0 0
    %94 = vmatprep.subr.bf16.mxu0 0
    %95 = vmatpush1.bf16.msra.mxu0 0
    %96 = vmatprep.subr.bf16.mxu0 %v72
    %97 = vmatpush1.bf16.msra.mxu0 %v71
    %98 = vmatprep.subr.bf16.mxu0 %v69
    %99 = vmatpush1.bf16.msra.mxu0 %v68
    %100 = vmatprep.subr.bf16.mxu0 0
    %101 = vmatpush2.bf16.msra.mxu0 0
    %102 = vmatprep.subr.bf16.mxu0 0
    %103 = vmatpush2.bf16.msra.mxu0 0
    %104 = vmatprep.subr.bf16.mxu0 0
    %105 = vmatpush2.bf16.msra.mxu0 0
    %106 = vmatprep.subr.bf16.mxu0 0
    %107 = vmatpush2.bf16.msra.mxu0 0
    %108 = vmatprep.subr.bf16.mxu0 0
    %109 = vmatpush2.bf16.msra.mxu0 0
    %110 = vmatprep.subr.bf16.mxu0 0
    %111 = vmatpush2.bf16.msra.mxu0 0
    %112 = vmatprep.subr.bf16.mxu0 0
    %113 = vmatpush2.bf16.msra.mxu0 0
    %114 = vmatprep.subr.bf16.mxu0 0
    %115 = vmatpush2.bf16.msra.mxu0 0
    %116 = vmatprep.mubr.bf16.mxu0 0
    %117 = vmatmul.mubr.bf16.gmra.mxu0 %v82
    %v118 = vpop.f32.mrf.mxu0
    %v119 = vadd.f32 0.0, %v118
    %v120 = vpop.f32.mrf.mxu0
    %v121 = vadd.f32 0.0, %v120
    %v122 = vpop.f32.mrf.mxu0
    %v123 = vpop.f32.mrf.mxu0
    %124 = vdwg.mxu0
    %125 = vmatprep.subr.bf16.mxu0 0
    %126 = vmatpush1.bf16.msra.mxu0 0
    %127 = vmatprep.subr.bf16.mxu0 0
    %128 = vmatpush1.bf16.msra.mxu0 0
    %129 = vmatprep.subr.bf16.mxu0 0
    %130 = vmatpush1.bf16.msra.mxu0 0
    %131 = vmatprep.subr.bf16.mxu0 0
    %132 = vmatpush1.bf16.msra.mxu0 0
    %133 = vmatprep.subr.bf16.mxu0 0
    %134 = vmatpush1.bf16.msra.mxu0 0
    %135 = vmatprep.subr.bf16.mxu0 0
    %136 = vmatpush1.bf16.msra.mxu0 0
    %137 = vmatprep.subr.bf16.mxu0 0
    %138 = vmatpush1.bf16.msra.mxu0 %v73
    %139 = vmatprep.subr.bf16.mxu0 0
    %140 = vmatpush1.bf16.msra.mxu0 %v70
    %141 = vmatprep.subr.bf16.mxu0 0
    %142 = vmatpush2.bf16.msra.mxu0 0
    %143 = vmatprep.subr.bf16.mxu0 0
    %144 = vmatpush2.bf16.msra.mxu0 0
    %145 = vmatprep.subr.bf16.mxu0 0
    %146 = vmatpush2.bf16.msra.mxu0 0
    %147 = vmatprep.subr.bf16.mxu0 0
    %148 = vmatpush2.bf16.msra.mxu0 0
    %149 = vmatprep.subr.bf16.mxu0 0
    %150 = vmatpush2.bf16.msra.mxu0 0
    %151 = vmatprep.subr.bf16.mxu0 0
    %152 = vmatpush2.bf16.msra.mxu0 0
    %153 = vmatprep.subr.bf16.mxu0 0
    %154 = vmatpush2.bf16.msra.mxu0 0
    %155 = vmatprep.subr.bf16.mxu0 0
    %156 = vmatpush2.bf16.msra.mxu0 0
    %157 = vmatprep.mubr.bf16.mxu0 0
    %158 = vmatmul.mubr.bf16.gmra.mxu0 %v82
    %v159 = vpop.f32.mrf.mxu0
    %v160 = vadd.f32 0.0, %v159
    %v161 = vpop.f32.mrf.mxu0
    %v162 = vpop.f32.mrf.mxu0
    %v163 = vpop.f32.mrf.mxu0
    %164 = vdwg.mxu0
    %v165 = vpack.c.bf16 %v119, %v119
    %v166 = vpack.c.bf16 %v121, %v121
    %v167 = vpack.c.bf16 %v160, %v160
    %168 = vmatprep.subr.bf16.mxu0 0
    %169 = vmatpush1.bf16.xpose.msra.mxu0 0
    %170 = vmatprep.subr.bf16.mxu0 0
    %171 = vmatpush1.bf16.xpose.msra.mxu0 0
    %172 = vmatprep.subr.bf16.mxu0 0
    %173 = vmatpush1.bf16.xpose.msra.mxu0 0
    %174 = vmatprep.subr.bf16.mxu0 0
    %175 = vmatpush1.bf16.xpose.msra.mxu0 0
    %176 = vmatprep.subr.bf16.mxu0 0
    %177 = vmatpush1.bf16.xpose.msra.mxu0 0
    %178 = vmatprep.subr.bf16.mxu0 0
    %179 = vmatpush1.bf16.xpose.msra.mxu0 0
    %180 = vmatprep.subr.bf16.mxu0 0
    %181 = vmatpush1.bf16.xpose.msra.mxu0 0
    %182 = vmatprep.subr.bf16.mxu0 0
    %183 = vmatpush1.bf16.xpose.msra.mxu0 %v166
    %184 = vmatprep.subr.bf16.mxu0 0
    %185 = vmatpush2.bf16.xpose.msra.mxu0 0
    %186 = vmatprep.subr.bf16.mxu0 0
    %187 = vmatpush2.bf16.xpose.msra.mxu0 0
    %188 = vmatprep.subr.bf16.mxu0 0
    %189 = vmatpush2.bf16.xpose.msra.mxu0 0
    %190 = vmatprep.subr.bf16.mxu0 0
    %191 = vmatpush2.bf16.xpose.msra.mxu0 0
    %192 = vmatprep.subr.bf16.mxu0 0
    %193 = vmatpush2.bf16.xpose.msra.mxu0 0
    %194 = vmatprep.subr.bf16.mxu0 0
    %195 = vmatpush2.bf16.xpose.msra.mxu0 0
    %196 = vmatprep.subr.bf16.mxu0 0
    %197 = vmatpush2.bf16.xpose.msra.mxu0 0
    %198 = vmatprep.subr.bf16.mxu0 0
    %199 = vmatpush2.bf16.xpose.msra.mxu0 0
    %200 = vmatprep.mubr.bf16.mxu0 0
    %201 = vmatmul.mubr.bf16.gmra.mxu0 %v165
    %v202 = vpop.f32.mrf.mxu0
    %v203 = vadd.f32 0.0, %v202
    %v204 = vpop.f32.mrf.mxu0
    %v205 = vpop.f32.mrf.mxu0
    %v206 = vpop.f32.mrf.mxu0
    %207 = vdwg.mxu0
    %vm208 = vcmask 64512
    %v209 = vsel %vm208, %v203, -inf
    %210 = vmax.xlane.f32.xlu0 %v209
    %v211 = vpop.xlane.xlu0 %210
    %v212 = vsub.f32 %v203, %v211
    %v213 = vmul.f32 %v212, 1.442695
    %v214 = vpow.pop %v213
    %v215 = vsel %vm208, %v214, 0.0
    %216 = vadd.xlane.f32.xlu0 %v215
    %v217 = vpop.xlane.xlu0 %216
    %v218 = vrcp.pop %v217
    %v219 = vmul.f32 %v214, %v218
    %v220 = vpack.c.bf16 %v219, %v219
    %v222 = vsel %vm208, %v220, 0
    %vm224 = vcmask 1043456
    %v226 = vsel %vm224, %v167, 0
    %228 = vmatprep.subr.bf16.mxu0 0
    %229 = vmatpush1.bf16.msra.mxu0 0
    %230 = vmatprep.subr.bf16.mxu0 0
    %231 = vmatpush1.bf16.msra.mxu0 0
    %232 = vmatprep.subr.bf16.mxu0 0
    %233 = vmatpush1.bf16.msra.mxu0 0
    %234 = vmatprep.subr.bf16.mxu0 0
    %235 = vmatpush1.bf16.msra.mxu0 0
    %236 = vmatprep.subr.bf16.mxu0 0
    %237 = vmatpush1.bf16.msra.mxu0 0
    %238 = vmatprep.subr.bf16.mxu0 0
    %239 = vmatpush1.bf16.msra.mxu0 0
    %240 = vmatprep.subr.bf16.mxu0 0
    %241 = vmatpush1.bf16.msra.mxu0 0
    %242 = vmatprep.subr.bf16.mxu0 0
    %243 = vmatpush1.bf16.msra.mxu0 %v226
    %244 = vmatprep.subr.bf16.mxu0 0
    %245 = vmatpush2.bf16.msra.mxu0 0
    %246 = vmatprep.subr.bf16.mxu0 0
    %247 = vmatpush2.bf16.msra.mxu0 0
    %248 = vmatprep.subr.bf16.mxu0 0
    %249 = vmatpush2.bf16.msra.mxu0 0
    %250 = vmatprep.subr.bf16.mxu0 0
    %251 = vmatpush2.bf16.msra.mxu0 0
    %252 = vmatprep.subr.bf16.mxu0 0
    %253 = vmatpush2.bf16.msra.mxu0 0
    %254 = vmatprep.subr.bf16.mxu0 0
    %255 = vmatpush2.bf16.msra.mxu0 0
    %256 = vmatprep.subr.bf16.mxu0 0
    %257 = vmatpush2.bf16.msra.mxu0 0
    %258 = vmatprep.subr.bf16.mxu0 0
    %259 = vmatpush2.bf16.msra.mxu0 0
    %260 = vmatprep.mubr.bf16.mxu0 0
    %261 = vmatmul.mubr.bf16.gmra.mxu0 %v222
    %v262 = vpop.f32.mrf.mxu0
    %v263 = vadd.f32 0.0, %v262
    %v264 = vpop.f32.mrf.mxu0
    %v265 = vpop.f32.mrf.mxu0
    %v266 = vpop.f32.mrf.mxu0
    %267 = vdwg.mxu0
    %268 = vst [vmem:[#allocation7] sm:$0xff] %v263
    // Predicated region
    $region18: #{tpu_custom_call.1} parent=1 // pred_check
      _
    $region19: #{tpu_custom_call.1} parent=1 // pred_check_branch
      %270 = sbr.rel (0) target = $region21
    $region20: #{tpu_custom_call.1} parent=1 // pred_region
      %s272 = ssub.s32 128, 128
      %273 = vsyncadd [#allocation4], %s272
      %s275 = sshll.u32 [#allocation7], 4
      %s276 = int_to_ptr.vmem [resolvable:$true] %s275
      %278 = dma.vmem_to_hbm [thread:$0]  %s276, 128, %s2, [#allocation4]
    $region21: #{tpu_custom_call.1} parent=1 // pred_fallthru
      _
    // Predicated region
    $region22: #{tpu_custom_call.1} parent=1 // pred_check
      _
    $region23: #{tpu_custom_call.1} parent=1 // pred_check_branch
      %280 = sbr.rel (0) target = $region25
    $region24: #{tpu_custom_call.1} parent=1 // pred_region
      %281 = dma.done [#allocation4], 128
    $region25: #{tpu_custom_call.1} parent=1 // pred_fallthru
      _
    %282 = vsyncpa [#allocation3], 1
    %283 = vsyncpa [#allocation6], 1
    %284 = vsyncpa [#allocation4], 1

</llo_original>
